<compile_context>
chip_gen: v5e
topology: v5e:2x2
jax: 0.10.0
libtpu: 0.0.40
codegen_flags: <defaults>
</compile_context>

<pallas_src>
import functools
import math

import jax
import jax.numpy as jnp
from jax.experimental import pallas as pl
from jax.experimental.pallas import tpu as pltpu

_LANE = 128
_SUBLANE = 8


def _round_up(x, m):
    return ((x + m - 1) // m) * m


def _vmem_capacity_bytes():
    """Physical VMEM per TensorCore (128 MiB on v5e/v6e, 64 MiB on v7x)."""
    try:
        info = pltpu.get_tpu_info()
        cap = getattr(info, "vmem_capacity_bytes", None)
        if cap:
            return int(cap)
    except Exception:
        pass
    return 64 << 20  # conservative fallback (v7x-sized)


def _vmem_limit_bytes(vmem_cap):
    return (96 << 20) if vmem_cap >= (100 << 20) else (48 << 20)


def _pick_block_n(N, M, F, O_pad, x_itemsize, vmem_cap):
    """Largest N-tile whose double-buffered tiles + temporaries fit a
    generation-aware VMEM budget, with a multi-step-grid cap on v7x."""
    sub = _SUBLANE
    # Per-row VMEM bytes.  The (bn, M, 1) mask block lane-pads to 128 lanes
    # and sublane-pads M; X/mask/output tiles are double-buffered; add one
    # X-tile-sized compute temporary (x * m) plus an f32 reduced row.
    x_row = M * F * x_itemsize
    m_row = _round_up(M, sub) * _LANE * x_itemsize
    o_row = O_pad * 4
    per_row = 2 * (x_row + m_row + o_row) + x_row + F * 4
    resident = F * O_pad * x_itemsize + O_pad * 4            # beta + bias

    limit = _vmem_limit_bytes(vmem_cap)
    if vmem_cap >= (100 << 20):        # v5e / v6e: 128 MiB physical VMEM
        budget = 40 << 20
        step_cap = None
    else:                              # v7x (64 MiB per TC) or unknown
        budget = 20 << 20
        # Keep >=2 (target 4) grid steps so both TensorCores get work and
        # DMA/compute overlap exists even for modest N.
        step_cap = _round_up(max(1, -(-N // 4)), sub)

    bn = max(sub, (budget - resident) // max(per_row, 1))
    bn = min(bn, 1024)
    if step_cap is not None:
        bn = min(bn, step_cap)
    # Prefer >=128 rows (full MXU columns, unmasked stores) when it fits.
    min_bn = 128 if step_cap is None else min(128, step_cap)
    if min_bn * per_row + resident <= (limit * 3) // 4:
        bn = max(bn, min_bn)
    bn = max(sub, (bn // sub) * sub)
    if bn >= N:
        bn = N                         # single full block (equals full dim)
    return int(bn)


def _make_kernel(reduction: str):
    def kernel(x_ref, mask_ref, beta_ref, bias_ref, y_ref):
        x = x_ref[...]                       # (bn, M, F), native dtype
        m = mask_ref[...]                    # (bn, M, 1), X.dtype

        if reduction in ("mean", "sum"):
            red = jnp.sum(x * m, axis=1)                              # (bn, F)
        elif reduction == "max":
            neg_inf = jnp.asarray(-jnp.inf, dtype=x.dtype)
            red = jnp.max(jnp.where(m > 0, x, neg_inf), axis=1)       # (bn, F)
        else:  # 'min'
            pos_inf = jnp.asarray(jnp.inf, dtype=x.dtype)
            red = jnp.min(jnp.where(m > 0, x, pos_inf), axis=1)       # (bn, F)

        y = jnp.dot(red, beta_ref[...], preferred_element_type=jnp.float32)

        if reduction == "mean":
            sizes = jnp.sum(m.astype(jnp.float32), axis=1)            # (bn, 1)
            # EUP reciprocal + one Newton-Raphson step (no VPU divide).
            # Fully-masked sets (sizes == 0) poison their own row only --
            # same behavior class as the PyTorch module's divide-by-zero.
            inv = pl.reciprocal(sizes, approx=True)
            inv = inv * (2.0 - sizes * inv)
            y = y * inv

        y_ref[...] = (y + bias_ref[...]).astype(y_ref.dtype)

    return kernel


@functools.partial(jax.jit, static_argnames=("reduction", "block_n"))
def inv_linear(X, mask=None, beta=None, bias=None, reduction="mean",
               block_n=None):
    """Permutation-invariant linear layer: y = reduction(X) @ beta + bias."""
    N, M, F = X.shape
    O = beta.shape[1]
    O_pad = _round_up(O, _LANE)

    vmem_cap = _vmem_capacity_bytes()
    vmem_limit = _vmem_limit_bytes(vmem_cap)
    if block_n is None:
        block_n = _pick_block_n(N, M, F, O_pad, X.dtype.itemsize, vmem_cap)
    else:
        block_n = max(_SUBLANE, (int(block_n) // _SUBLANE) * _SUBLANE)
        if block_n >= N:
            block_n = N

    if mask is None:
        mask = jnp.ones((N, M), X.dtype)
    # Trailing-singleton mask layout => cheap lane broadcast inside the
    # kernel.  Carried in X.dtype (halves mask traffic for bf16 inputs).
    mask3 = mask.astype(X.dtype).reshape(N, M, 1)

    # Lane-dense output slab (O padded to a multiple of 128, sliced outside).
    beta = beta.astype(X.dtype)
    if bias is None:
        bias = jnp.zeros((1, O), jnp.float32)
    bias = bias.astype(jnp.float32)
    if O_pad != O:
        beta = jnp.pad(beta, ((0, 0), (0, O_pad - O)))
        bias = jnp.pad(bias, ((0, 0), (0, O_pad - O)))

    # cdiv grid: the last block may be partial -- no whole-X pad copy.  Rows
    # are per-set independent, so garbage tail rows never touch valid rows
    # and are sliced off below.
    grid = ((N + block_n - 1) // block_n,)
    kernel = _make_kernel(reduction)

    y = pl.pallas_call(
        kernel,
        out_shape=jax.ShapeDtypeStruct((N, O_pad), jnp.float32),
        grid=grid,
        in_specs=[
            pl.BlockSpec((block_n, M, F), lambda i: (i, 0, 0)),
            pl.BlockSpec((block_n, M, 1), lambda i: (i, 0, 0)),
            pl.BlockSpec((F, O_pad), lambda i: (0, 0)),   # VMEM-resident
            pl.BlockSpec((1, O_pad), lambda i: (0, 0)),   # VMEM-resident
        ],
        out_specs=pl.BlockSpec((block_n, O_pad), lambda i: (i, 0)),
        compiler_params=pltpu.CompilerParams(
            dimension_semantics=("parallel",),
            vmem_limit_bytes=vmem_limit,
        ),
    )(X, mask3, beta, bias)

    return y[:, :O]


def _reference(X, mask, beta, bias, reduction="mean"):
    """Pure-JAX reference matching the PyTorch forward exactly."""
    m = mask.astype(jnp.float32)
    if reduction == "mean":
        sizes = m.sum(axis=1, keepdims=True)
        y = (X * m[:, :, None]).sum(axis=1) @ beta / sizes
    elif reduction == "sum":
        y = (X * m[:, :, None]).sum(axis=1) @ beta
    elif reduction == "max":
        y = jnp.where(m[:, :, None] > 0, X, -jnp.inf).max(axis=1) @ beta
    else:
        y = jnp.where(m[:, :, None] > 0, X, jnp.inf).min(axis=1) @ beta
    return y + bias


if __name__ == "__main__":

    def run_case(N, M, F, O, seed, block_n=None):
        key = jax.random.fold_in(jax.random.PRNGKey(0), seed)
        kx, kb, kbias, kmask = jax.random.split(key, 4)

        # Parameter init mirroring reset_parameters():
        #   xavier_uniform_ for beta, uniform(+-1/sqrt(fan_in)) for bias.
        xavier_bound = math.sqrt(6.0 / (F + O))
        beta = jax.random.uniform(kb, (F, O), jnp.float32,
                                  -xavier_bound, xavier_bound)
        bias_bound = 1.0 / math.sqrt(F)
        bias = jax.random.uniform(kbias, (1, O), jnp.float32,
                                  -bias_bound, bias_bound)

        X = jax.random.normal(kx, (N, M, F), jnp.float32)
        mask = (jax.random.uniform(kmask, (N, M)) > 0.3).astype(jnp.float32)
        mask = mask.at[:, 0].set(1.0)   # at least one valid element per set

        case_ok = True
        for reduction in ("mean", "sum", "max", "min"):
            y = inv_linear(X, mask, beta, bias,
                           reduction=reduction, block_n=block_n)
            jax.block_until_ready(y)
            y_ref = _reference(X, mask, beta, bias, reduction=reduction)
            if not jnp.allclose(y, y_ref, atol=1e-4, rtol=1e-4):
                case_ok = False
                err = float(jnp.max(jnp.abs(y - y_ref)))
                print(f"MISMATCH N={N} M={M} F={F} O={O} "
                      f"reduction={reduction} max_err={err:.3e}")
        return case_ok

    ok = True
    # Small shapes consistent with the module: 2 sets, 8 elements, 32 features.
    ok &= run_case(N=2, M=8, F=32, O=16, seed=0)
    # Multi-tile grid with a PARTIAL last block (3 x 128 over N=300) and
    # O -> 128 lane padding.
    ok &= run_case(N=300, M=16, F=64, O=48, seed=1, block_n=128)
    # Auto-picked block_n (exercises the generation-aware VMEM sizing path).
    ok &= run_case(N=300, M=16, F=64, O=48, seed=2, block_n=None)

    if ok:
        print("KERNEL_OK")
</pallas_src>

<mosaic_0001>
module attributes {stable_mosaic.version = 11 : i64} {
  func.func @kernel(%arg0: i32, %arg1: memref<2x8x32xf32, #tpu.memory_space<vmem>>, %arg2: memref<2x8x1xf32, #tpu.memory_space<vmem>>, %arg3: memref<32x128xf32, #tpu.memory_space<vmem>>, %arg4: memref<1x128xf32, #tpu.memory_space<vmem>>, %arg5: memref<2x128xf32, #tpu.memory_space<vmem>>) attributes {dimension_semantics = [#tpu.dimension_semantics<parallel>], iteration_bounds = array<i64: 1>, scalar_prefetch = 0 : i64, scratch_operands = 0 : i64, tpu.core_type = #tpu.core_type<tc>, window_params = [{transform_indices = @transform_0, window_bounds = array<i64: 2, 8, 32>}, {transform_indices = @transform_1, window_bounds = array<i64: 2, 8, 1>}, {pipeline_mode = #tpu.pipeline_mode<synchronous>, transform_indices = @transform_2, window_bounds = array<i64: 32, 128>}, {pipeline_mode = #tpu.pipeline_mode<synchronous>, transform_indices = @transform_3, window_bounds = array<i64: 1, 128>}, {transform_indices = @transform_4, window_bounds = array<i64: 2, 128>}]} {
    %c0 = arith.constant 0 : index
    %c0_0 = arith.constant 0 : index
    %c0_1 = arith.constant 0 : index
    %0 = vector.load %arg1[%c0, %c0_0, %c0_1] : memref<2x8x32xf32, #tpu.memory_space<vmem>>, vector<2x8x32xf32>
    %c0_2 = arith.constant 0 : index
    %c0_3 = arith.constant 0 : index
    %c0_4 = arith.constant 0 : index
    %1 = vector.load %arg2[%c0_2, %c0_3, %c0_4] : memref<2x8x1xf32, #tpu.memory_space<vmem>>, vector<2x8x1xf32>
    %2 = vector.broadcast %1 : vector<2x8x1xf32> to vector<2x8x32xf32>
    %3 = arith.mulf %0, %2 : vector<2x8x32xf32>
    %cst = arith.constant dense<0.000000e+00> : vector<2x32xf32>
    %4 = vector.multi_reduction <add>, %3, %cst [1] : vector<2x8x32xf32> to vector<2x32xf32>
    %c0_5 = arith.constant 0 : index
    %c0_6 = arith.constant 0 : index
    %5 = vector.load %arg3[%c0_5, %c0_6] : memref<32x128xf32, #tpu.memory_space<vmem>>, vector<32x128xf32>
    %cst_7 = arith.constant dense<0.000000e+00> : vector<2x128xf32>
    %6 = tpu.matmul %4, %5, %cst_7 {dimension_numbers = #tpu.dot_dimension_numbers<[1], [0], [0], [1], [0, 0, 1, 1], [], []>} : vector<2x32xf32>, vector<32x128xf32>, vector<2x128xf32> -> vector<2x128xf32>
    %cst_8 = arith.constant dense<0.000000e+00> : vector<2x1xf32>
    %7 = vector.multi_reduction <add>, %1, %cst_8 [1] : vector<2x8x1xf32> to vector<2x1xf32>
    %8 = tpu.reciprocal %7 {approx = true} : vector<2x1xf32> -> vector<2x1xf32>
    %9 = arith.mulf %7, %8 : vector<2x1xf32>
    %cst_9 = arith.constant 2.000000e+00 : f32
    %10 = vector.broadcast %cst_9 : f32 to vector<2x1xf32>
    %11 = arith.subf %10, %9 : vector<2x1xf32>
    %12 = arith.mulf %8, %11 : vector<2x1xf32>
    %13 = vector.broadcast %12 : vector<2x1xf32> to vector<2x128xf32>
    %14 = arith.mulf %6, %13 : vector<2x128xf32>
    %c0_10 = arith.constant 0 : index
    %c0_11 = arith.constant 0 : index
    %15 = vector.load %arg4[%c0_10, %c0_11] : memref<1x128xf32, #tpu.memory_space<vmem>>, vector<1x128xf32>
    %16 = vector.broadcast %15 : vector<1x128xf32> to vector<2x128xf32>
    %17 = arith.addf %14, %16 : vector<2x128xf32>
    %c0_12 = arith.constant 0 : index
    %c0_13 = arith.constant 0 : index
    %18 = vector.load %arg5[%c0_12, %c0_13] : memref<2x128xf32, #tpu.memory_space<vmem>>, vector<2x128xf32>
    tpu.vector_store %arg5[%c0_12, %c0_13], %17 {strides = array<i32>} : memref<2x128xf32, #tpu.memory_space<vmem>>, vector<2x128xf32>,
    return
  }
  func.func @transform_0(%arg0: i32) -> (i32, i32, i32) {
    %c0_i32 = arith.constant 0 : i32
    %c0_i32_0 = arith.constant 0 : i32
    %c0_i32_1 = arith.constant 0 : i32
    return %arg0, %c0_i32, %c0_i32_0 : i32, i32, i32
  }
  func.func @transform_1(%arg0: i32) -> (i32, i32, i32) {
    %c0_i32 = arith.constant 0 : i32
    %c0_i32_0 = arith.constant 0 : i32
    %c0_i32_1 = arith.constant 0 : i32
    return %arg0, %c0_i32, %c0_i32_0 : i32, i32, i32
  }
  func.func @transform_2(%arg0: i32) -> (i32, i32) {
    %c0_i32 = arith.constant 0 : i32
    %c0_i32_0 = arith.constant 0 : i32
    %c0_i32_1 = arith.constant 0 : i32
    return %c0_i32, %c0_i32_0 : i32, i32
  }
  func.func @transform_3(%arg0: i32) -> (i32, i32) {
    %c0_i32 = arith.constant 0 : i32
    %c0_i32_0 = arith.constant 0 : i32
    %c0_i32_1 = arith.constant 0 : i32
    return %c0_i32, %c0_i32_0 : i32, i32
  }
  func.func @transform_4(%arg0: i32) -> (i32, i32) {
    %c0_i32 = arith.constant 0 : i32
    %c0_i32_0 = arith.constant 0 : i32
    return %arg0, %c0_i32 : i32, i32
  }
}

</mosaic_0001>

<llo_original>
// kernel: inv_linear.1
$region0: #{inv_linear.1}
  #allocation0 [shape = 'u32[]', space=smem, size = 0x4, offset = 0x4, fixed_abs, tag = 'smem constant byte address 0x4 - core index']
  #allocation1 [shape = 'u32[72,128]{1,0:T(1,128)}', space=vmem, size = 0x9000, scoped, tag = 'internal scratch']
  %s0 = inlined_call_operand.vmem [shape: f32[2,8,32], index: 0, kind: input, shape index: {}]
  %s1 = inlined_call_operand.vmem [shape: f32[2,8,1], index: 1, kind: input, shape index: {}]
  %s2 = inlined_call_operand.vmem [shape: f32[32,128], index: 2, kind: input, shape index: {}]
  %s3 = inlined_call_operand.vmem [shape: f32[1,128], index: 3, kind: input, shape index: {}]
  %s4 = inlined_call_operand.hbm [shape: f32[2,128], index: 4, kind: output, shape index: {}]
  %s5 = sld [smem:[#allocation0]]
  $region26: #{inv_linear.1} parent=0
    _
  %s7 = ssub.s32 1, %s5
  %s8 = scalar_select 0, %s7, %s5
  $region1: #{inv_linear.1} parent=0
    #allocation2 [shape = 'u8[1024]{0}', space=vmem, size = 0x400, scoped, tag = 'output window, operand 0, single buffered']
    #allocation3 [shape = 's32[1]{0}', space=sflag, size = 0x4, scoped, tag = 'scoped memory for inv_linear.1']
    %9 = vsyncpa [#allocation3], 0
    // Predicated region
    $region2: #{inv_linear.1} parent=1 // pred_check
      _
    $region3: #{inv_linear.1} parent=1 // pred_check_branch
      %11 = sbr.rel (0) target = $region5
    $region4: #{inv_linear.1} parent=1 // pred_region
      _
    $region5: #{inv_linear.1} parent=1 // pred_fallthru
      _
    // Predicated region
    $region6: #{inv_linear.1} parent=1 // pred_check
      _
    $region7: #{inv_linear.1} parent=1 // pred_check_branch
      %13 = sbr.rel (0) target = $region9
    $region8: #{inv_linear.1} parent=1 // pred_region
      _
    $region9: #{inv_linear.1} parent=1 // pred_fallthru
      _
    // Predicated region
    $region10: #{inv_linear.1} parent=1 // pred_check
      _
    $region11: #{inv_linear.1} parent=1 // pred_check_branch
      %15 = sbr.rel (0) target = $region13
    $region12: #{inv_linear.1} parent=1 // pred_region
      _
    $region13: #{inv_linear.1} parent=1 // pred_fallthru
      _
    // Predicated region
    $region14: #{inv_linear.1} parent=1 // pred_check
      _
    $region15: #{inv_linear.1} parent=1 // pred_check_branch
      %17 = sbr.rel (0) target = $region17
    $region16: #{inv_linear.1} parent=1 // pred_region
      _
    $region17: #{inv_linear.1} parent=1 // pred_fallthru
      _
    %v18 = vld [vmem:[%s0] sm:$0xff]
    %v19 = vld [vmem:[%s0 + $0x8] sm:$0xff]
    %v20 = vld [vmem:[%s1] sm:$0xff]
    %v21 = vld [vmem:[%s1 + $0x8] sm:$0xff]
    %23 = vset.pattern.permute.xlu0 0
    %24 = vperm.xlu0 %23, %v20
    %v25 = vpop.permute.xlu0 %24
    %28 = vset.pattern.permute.xlu0 0
    %29 = vperm.xlu0 %28, %v21
    %v30 = vpop.permute.xlu0 %29
    %v32 = vmul.f32 %v18, %v25
    %v33 = vmul.f32 %v19, %v30
    %vm34 = vcmask 261120
    %v35 = vsel %vm34, %v32, 0.0
    %v36 = vrot.slane %v35, 4
    %v37 = vadd.f32 %v35, %v36
    %v38 = vrot.slane %v37, 2
    %v39 = vadd.f32 %v37, %v38
    %v40 = vrot.slane %v39, 1
    %v41 = vadd.f32 %v39, %v40
    %v42 = vsel %vm34, %v33, 0.0
    %v43 = vrot.slane %v42, 4
    %v44 = vadd.f32 %v42, %v43
    %v45 = vrot.slane %v44, 2
    %v46 = vadd.f32 %v44, %v45
    %v47 = vrot.slane %v46, 1
    %v48 = vadd.f32 %v46, %v47
    %v49 = vld [vmem:[%s2] sm:$0xff]
    %v50 = vld [vmem:[%s2 + $0x8] sm:$0xff]
    %v51 = vld [vmem:[%s2 + $0x10] sm:$0xff]
    %v52 = vld [vmem:[%s2 + $0x18] sm:$0xff]
    %vm55 = vcmask 1041409
    %v56 = vsel %vm55, %v48, %v41
    %v57 = vsel %vm34, %v56, 0
    %59 = vmatpush.msra.mxu0 0.0
    %60 = vmatpush.msra.mxu0 0.0
    %61 = vmatpush.msra.mxu0 0.0
    %62 = vmatpush.msra.mxu0 0.0
    %63 = vmatpush.msra.mxu0 0.0
    %64 = vmatpush.msra.mxu0 0.0
    %65 = vmatpush.msra.mxu0 0.0
    %66 = vmatpush.msra.mxu0 0.0
    %67 = vmatpush.msra.mxu0 0.0
    %68 = vmatpush.msra.mxu0 0.0
    %69 = vmatpush.msra.mxu0 0.0
    %70 = vmatpush.msra.mxu0 0.0
    %71 = vmatpush.msra.mxu0 %v52
    %72 = vmatpush.msra.mxu0 %v51
    %73 = vmatpush.msra.mxu0 %v50
    %74 = vmatpush.msra.mxu0 %v49
    %75 = vmatmul.f32.gmra.mxu0 %v57
    %v76 = vpop.f32.mrf.mxu0
    %v77 = vadd.f32 0.0, %v76
    %78 = vdwg.mxu0
    %vm79 = vcmask 7168
    %v80 = vsel %vm79, %v20, 0.0
    %v81 = vrot.slane %v80, 4
    %v82 = vadd.f32 %v80, %v81
    %v83 = vrot.slane %v82, 2
    %v84 = vadd.f32 %v82, %v83
    %v85 = vrot.slane %v84, 1
    %v86 = vadd.f32 %v84, %v85
    %v87 = vsel %vm79, %v21, 0.0
    %v88 = vrot.slane %v87, 4
    %v89 = vadd.f32 %v87, %v88
    %v90 = vrot.slane %v89, 2
    %v91 = vadd.f32 %v89, %v90
    %v92 = vrot.slane %v91, 1
    %v93 = vadd.f32 %v91, %v92
    %v94 = vrcp.pop %v86
    %v95 = vrcp.pop %v93
    %v96 = vmul.f32 %v86, %v94
    %v97 = vmul.f32 %v93, %v95
    %v98 = vsub.f32 2.0, %v96
    %v99 = vsub.f32 2.0, %v97
    %v100 = vmul.f32 %v94, %v98
    %v101 = vmul.f32 %v95, %v99
    %103 = vset.pattern.permute.xlu0 0
    %104 = vperm.xlu0 %103, %v100
    %v105 = vpop.permute.xlu0 %104
    %107 = vset.pattern.permute.xlu0 0
    %108 = vperm.xlu0 %107, %v101
    %v109 = vpop.permute.xlu0 %108
    %v110 = vsel %vm55, %v109, %v105
    %v112 = vmul.f32 %v77, %v110
    %v113 = vld [vmem:[%s3] sm:$0x1]
    %v115 = vperm.slane %v113, 0
    %v117 = vadd.f32 %v112, %v115
    %118 = vst [vmem:[#allocation2] sm:$0x3] %v117
    // Predicated region
    $region18: #{inv_linear.1} parent=1 // pred_check
      _
    $region19: #{inv_linear.1} parent=1 // pred_check_branch
      %120 = sbr.rel (0) target = $region21
    $region20: #{inv_linear.1} parent=1 // pred_region
      %122 = vsyncadd [#allocation3], 0
      %s124 = sshll.u32 [#allocation2], 4
      %s125 = int_to_ptr.vmem [resolvable:$true] %s124
      %s126 = sshll.u32 %s4, 4
      %s127 = int_to_ptr.hbm [resolvable:$true] %s126
      %129 = dma.vmem_to_hbm [thread:$0]  %s125, 32, %s127, [#allocation3]
    $region21: #{inv_linear.1} parent=1 // pred_fallthru
      _
    // Predicated region
    $region22: #{inv_linear.1} parent=1 // pred_check
      _
    $region23: #{inv_linear.1} parent=1 // pred_check_branch
      %131 = sbr.rel (0) target = $region25
    $region24: #{inv_linear.1} parent=1 // pred_region
      %133 = dma.done [#allocation3], 32
    $region25: #{inv_linear.1} parent=1 // pred_fallthru
      _
    %134 = vsyncpa [#allocation3], 1

</llo_original>
